<compile_context>
chip_gen: v7x
topology: tpu7x:2x2x1
jax: 0.10.0
libtpu: 0.0.40
codegen_flags: <defaults>
</compile_context>

<pallas_src>
import functools

import jax
import jax.numpy as jnp
from jax.experimental import pallas as pl
from jax.experimental.pallas import tpu as pltpu


# ----------------------------- kernel ----------------------------------------

def _fused_attr_kernel(x_ref, wp_ref, bp_ref, wh_ref, bh_ref, out_ref):
    """GAP -> encoder projection -> all attr heads, fused.

    x_ref  : (B, C, HW)  f32   input, spatial dims flattened onto the lane axis
    wp_ref : (C, F)      bf16  encoder proj weight, 1/HW GAP scale folded in
    bp_ref : (1, F)      f32   encoder proj bias
    wh_ref : (F, OUT)    bf16  all heads' weights, head-major columns (OUT=Hd*CLS)
    bh_ref : (1, OUT)    f32   all heads' biases,  head-major columns
    out_ref: (B, OUT)    f32
    """
    # GAP as a lane-axis sum (1/HW folded into wp); the reduce runs on the XLU.
    pooled = jnp.sum(x_ref[...], axis=-1)                              # (B, C) f32

    # Native bf16 MXU path with f32 accumulation (no f32 upcast of weights).
    feat = jnp.dot(pooled.astype(jnp.bfloat16), wp_ref[...],
                   preferred_element_type=jnp.float32) + bp_ref[...]   # (B, F) f32

    out = jnp.dot(feat.astype(jnp.bfloat16), wh_ref[...],
                  preferred_element_type=jnp.float32) + bh_ref[...]    # (B, OUT) f32
    out_ref[...] = out


# ----------------------------- wrapper ----------------------------------------

@functools.partial(jax.jit, static_argnames=("num_heads", "num_cls"))
def attr_model_forward(x, packed, *, num_heads, num_cls):
    """Returns stacked head outputs of shape (num_heads, B, num_cls)."""
    B, C, H, W = x.shape
    wp, bp = packed["proj_w"], packed["proj_b"]      # (C, F) bf16, (1, F) f32
    wh, bh = packed["head_w"], packed["head_b"]      # (F, OUT) bf16, (1, OUT) f32
    out_total = wh.shape[1]
    assert out_total == num_heads * num_cls

    # Free contiguous reshape: put H*W on the lane axis for the pooling reduce.
    x3d = x.reshape(B, C, H * W)

    # Grid-less call: single invocation, all (tiny) operands resident in VMEM;
    # no 1-step pipeline prologue/epilogue, no double-buffered weight copy.
    # TODO(synk): if real backbone activations (large B*C*H*W) are ever fed in,
    # tile x over B with a grid (B axis "parallel" so v7x's 2nd TensorCore is
    # used), keep the (F, OUT) weight resident, and derive the tile size from
    # v7x's 64 MiB VMEM (32 MiB scoped default) rather than v5e/v6e's 128 MiB.
    out_slab = pl.pallas_call(
        _fused_attr_kernel,
        out_shape=jax.ShapeDtypeStruct((B, out_total), jnp.float32),
        in_specs=[pl.BlockSpec(memory_space=pltpu.MemorySpace.VMEM)] * 5,
        out_specs=pl.BlockSpec(memory_space=pltpu.MemorySpace.VMEM),
    )(x3d, wp, bp, wh, bh)

    # Wrapper-side (free) reshape + transpose == torch.stack(res).
    return out_slab.reshape(B, num_heads, num_cls).transpose(1, 0, 2)


# ----------------------------- params -----------------------------------------

def init_params(key, in_channels, num_feat, num_heads, cls):
    """PyTorch-layout f32 parameters (per-head Linear weights)."""
    k1, k2, k3, k4 = jax.random.split(key, 4)
    scale_p = 1.0 / jnp.sqrt(in_channels)
    scale_h = 1.0 / jnp.sqrt(num_feat)
    return {
        "proj_w": (jax.random.normal(k1, (in_channels, num_feat), jnp.float32)
                   * scale_p),
        "proj_b": (jax.random.normal(k2, (1, num_feat), jnp.float32)
                   * scale_p),
        # Stored as (heads, F, CLS) == transposed nn.Linear weight per head.
        "head_w": (jax.random.normal(k3, (num_heads, num_feat, cls), jnp.float32)
                   * scale_h),
        "head_b": (jax.random.normal(k4, (num_heads, 1, cls), jnp.float32)
                   * scale_h),
    }


def pack_params(params, hw):
    """One-time prep OUTSIDE the jitted per-call path:
       * fold the 1/HW GAP scale into the projection weight,
       * concatenate per-head weights into one (F, Hd*CLS) matrix
         (head-major column order — must match the wrapper's reshape),
       * store the two matmul weights in bf16 (halves the dominant weight DMA);
         biases stay f32 and are added after the f32-accumulated matmuls.
    """
    # TODO(synk): for further DMA cuts, quantize head_w to int8 (v5e/v6e MXU)
    # or fp8 e4m3 (v7x MXU, which dropped int8) with per-column scales; bf16
    # keeps a single code path across generations here.
    f_dim = params["proj_w"].shape[1]
    n_heads, _, n_cls = params["head_w"].shape
    out_total = n_heads * n_cls
    head_w_packed = (params["head_w"].transpose(1, 0, 2)
                     .reshape(f_dim, out_total).astype(jnp.bfloat16))
    return {
        "proj_w": (params["proj_w"] * (1.0 / hw)).astype(jnp.bfloat16),        # (C, F)
        "proj_b": params["proj_b"].astype(jnp.float32),                        # (1, F)
        "head_w": head_w_packed,                                               # (F, Hd*CLS)
        "head_b": params["head_b"].reshape(1, out_total).astype(jnp.float32),  # (1, Hd*CLS)
    }


def reference_forward(x, params):
    """Pure-JAX f32 reference mirroring the PyTorch module."""
    pooled = jnp.mean(x.astype(jnp.float32), axis=(2, 3))
    feat = pooled @ params["proj_w"] + params["proj_b"]
    outs = [feat @ params["head_w"][h] + params["head_b"][h]
            for h in range(params["head_w"].shape[0])]
    return jnp.stack(outs)


# ----------------------------- main -------------------------------------------

if __name__ == "__main__":
    key = jax.random.PRNGKey(0)
    kx, kp = jax.random.split(key)

    B, C, H, W = 2, 4, 16, 16
    NUM_FEAT = 1536
    NUM_HEADS = 5
    CLS = 3

    x = jax.random.normal(kx, (B, C, H, W), jnp.float32)
    params = init_params(kp, C, NUM_FEAT, NUM_HEADS, CLS)
    packed = pack_params(params, H * W)   # one-time, outside the per-call path

    out = attr_model_forward(x, packed, num_heads=NUM_HEADS, num_cls=CLS)
    out = jax.block_until_ready(out)

    ref = reference_forward(x, params)
    assert out.shape == (NUM_HEADS, B, CLS), out.shape
    # Kernel uses bf16 weights (f32 accumulation) vs. the pure-f32 reference.
    assert jnp.allclose(out, ref, atol=5e-2, rtol=5e-2), \
        float(jnp.max(jnp.abs(out - ref)))

    print("KERNEL_OK")
</pallas_src>

<mosaic_0001>
module attributes {stable_mosaic.version = 11 : i64} {
  func.func @_fused_attr_kernel(%arg0: memref<2x4x256xf32, #tpu.memory_space<vmem>>, %arg1: memref<4x1536xbf16, #tpu.memory_space<vmem>>, %arg2: memref<1x1536xf32, #tpu.memory_space<vmem>>, %arg3: memref<1536x15xbf16, #tpu.memory_space<vmem>>, %arg4: memref<1x15xf32, #tpu.memory_space<vmem>>, %arg5: memref<2x15xf32, #tpu.memory_space<vmem>>) attributes {dimension_semantics = [], scalar_prefetch = 0 : i64, scratch_operands = 0 : i64, tpu.core_type = #tpu.core_type<tc>} {
    %c0 = arith.constant 0 : index
    %c0_0 = arith.constant 0 : index
    %c0_1 = arith.constant 0 : index
    %0 = vector.load %arg0[%c0, %c0_0, %c0_1] : memref<2x4x256xf32, #tpu.memory_space<vmem>>, vector<2x4x256xf32>
    %cst = arith.constant dense<0.000000e+00> : vector<2x4xf32>
    %1 = vector.multi_reduction <add>, %0, %cst [2] : vector<2x4x256xf32> to vector<2x4xf32>
    %2 = arith.truncf %1 : vector<2x4xf32> to vector<2x4xbf16>
    %c0_2 = arith.constant 0 : index
    %c0_3 = arith.constant 0 : index
    %3 = vector.load %arg1[%c0_2, %c0_3] : memref<4x1536xbf16, #tpu.memory_space<vmem>>, vector<4x1536xbf16>
    %cst_4 = arith.constant dense<0.000000e+00> : vector<2x1536xf32>
    %4 = tpu.matmul %2, %3, %cst_4 {dimension_numbers = #tpu.dot_dimension_numbers<[1], [0], [0], [1], [0, 0, 1, 1], [], []>} : vector<2x4xbf16>, vector<4x1536xbf16>, vector<2x1536xf32> -> vector<2x1536xf32>
    %c0_5 = arith.constant 0 : index
    %c0_6 = arith.constant 0 : index
    %5 = vector.load %arg2[%c0_5, %c0_6] : memref<1x1536xf32, #tpu.memory_space<vmem>>, vector<1x1536xf32>
    %6 = vector.broadcast %5 : vector<1x1536xf32> to vector<2x1536xf32>
    %7 = arith.addf %4, %6 : vector<2x1536xf32>
    %8 = arith.truncf %7 : vector<2x1536xf32> to vector<2x1536xbf16>
    %c0_7 = arith.constant 0 : index
    %c0_8 = arith.constant 0 : index
    %9 = vector.load %arg3[%c0_7, %c0_8] : memref<1536x15xbf16, #tpu.memory_space<vmem>>, vector<1536x15xbf16>
    %cst_9 = arith.constant dense<0.000000e+00> : vector<2x15xf32>
    %10 = tpu.matmul %8, %9, %cst_9 {dimension_numbers = #tpu.dot_dimension_numbers<[1], [0], [0], [1], [0, 0, 1, 1], [], []>} : vector<2x1536xbf16>, vector<1536x15xbf16>, vector<2x15xf32> -> vector<2x15xf32>
    %c0_10 = arith.constant 0 : index
    %c0_11 = arith.constant 0 : index
    %11 = vector.load %arg4[%c0_10, %c0_11] : memref<1x15xf32, #tpu.memory_space<vmem>>, vector<1x15xf32>
    %12 = vector.broadcast %11 : vector<1x15xf32> to vector<2x15xf32>
    %13 = arith.addf %10, %12 : vector<2x15xf32>
    %c0_12 = arith.constant 0 : index
    %c0_13 = arith.constant 0 : index
    %14 = vector.load %arg5[%c0_12, %c0_13] : memref<2x15xf32, #tpu.memory_space<vmem>>, vector<2x15xf32>
    tpu.vector_store %arg5[%c0_12, %c0_13], %13 {strides = array<i32>} : memref<2x15xf32, #tpu.memory_space<vmem>>, vector<2x15xf32>,
    return
  }
}

</mosaic_0001>

<llo_original>
// kernel: attr_model_forward.1
$region0: #{attr_model_forward.1}
  #allocation0 [shape = 'u32[]', space=smem, size = 0x4, offset = 0x4, fixed_abs, tag = 'smem constant byte address 0x4 - core index']
  #allocation1 [shape = 'u32[144,128]{1,0:T(1,128)}', space=vmem, size = 0x12000, scoped, tag = 'internal scratch']
  %s0 = inlined_call_operand.vmem [shape: f32[2,4,256], index: 0, kind: input, shape index: {}]
  %s1 = inlined_call_operand.vmem [shape: bf16[4,1536], index: 1, kind: input, shape index: {}]
  %s2 = inlined_call_operand.vmem [shape: f32[1,1536], index: 2, kind: input, shape index: {}]
  %s3 = inlined_call_operand.vmem [shape: bf16[1536,15], index: 3, kind: input, shape index: {}]
  %s4 = inlined_call_operand.vmem [shape: f32[1,15], index: 4, kind: input, shape index: {}]
  %s5 = inlined_call_operand.vmem [shape: f32[2,15], index: 5, kind: output, shape index: {}]
  %s6 = sld [smem:[#allocation0]]
  $region30: #{attr_model_forward.1} parent=0
    _
  %s8 = ssub.s32 1, %s6
  %s9 = scalar_select 0, %s8, %s6
  // Predicated region
  $region2: #{attr_model_forward.1} parent=0 // pred_check
    _
  $region3: #{attr_model_forward.1} parent=0 // pred_check_branch
    %11 = sbr.rel (0) target = $region5
  $region4: #{attr_model_forward.1} parent=0 // pred_region
    _
  $region5: #{attr_model_forward.1} parent=0 // pred_fallthru
    _
  // Predicated region
  $region6: #{attr_model_forward.1} parent=0 // pred_check
    _
  $region7: #{attr_model_forward.1} parent=0 // pred_check_branch
    %13 = sbr.rel (0) target = $region9
  $region8: #{attr_model_forward.1} parent=0 // pred_region
    _
  $region9: #{attr_model_forward.1} parent=0 // pred_fallthru
    _
  // Predicated region
  $region10: #{attr_model_forward.1} parent=0 // pred_check
    _
  $region11: #{attr_model_forward.1} parent=0 // pred_check_branch
    %15 = sbr.rel (0) target = $region13
  $region12: #{attr_model_forward.1} parent=0 // pred_region
    _
  $region13: #{attr_model_forward.1} parent=0 // pred_fallthru
    _
  // Predicated region
  $region14: #{attr_model_forward.1} parent=0 // pred_check
    _
  $region15: #{attr_model_forward.1} parent=0 // pred_check_branch
    %17 = sbr.rel (0) target = $region17
  $region16: #{attr_model_forward.1} parent=0 // pred_region
    _
  $region17: #{attr_model_forward.1} parent=0 // pred_fallthru
    _
  // Predicated region
  $region18: #{attr_model_forward.1} parent=0 // pred_check
    _
  $region19: #{attr_model_forward.1} parent=0 // pred_check_branch
    %19 = sbr.rel (0) target = $region21
  $region20: #{attr_model_forward.1} parent=0 // pred_region
    _
  $region21: #{attr_model_forward.1} parent=0 // pred_fallthru
    _
  %v21 = vld [vmem:[%s0] sm:$0xff]
  %v22 = vld [vmem:[%s0 + $0x8] sm:$0xff]
  %v25 = vcombine.high %v21, %v21
  %v26 = vcombine.high %v22, %v22
  %vm29 = vcmask 1043456
  %v30 = vsel %vm29, %v21, 0.0
  %v31 = vsel %vm29, %v25, 0.0
  %v32 = vadd.f32 %v30, %v31
  %33 = vadd.xlane.f32.xlu0 %v32
  %v34 = vpop.xlane.xlu0 %33
  %v35 = vsel %vm29, %v22, 0.0
  %v36 = vsel %vm29, %v26, 0.0
  %v37 = vadd.f32 %v35, %v36
  %38 = vadd.xlane.f32.xlu0 %v37
  %v39 = vpop.xlane.xlu0 %38
  %v40 = vpack.c.bf16 %v34, %v34
  %v41 = vpack.c.bf16 %v39, %v39
  %v42 = vld [vmem:[%s1] sm:$0xff]
  %v43 = vld [vmem:[%s1 + $0x8] sm:$0xff]
  %v44 = vld [vmem:[%s1 + $0x10] sm:$0xff]
  %v45 = vld [vmem:[%s2] sm:$0xff]
  %v46 = vld [vmem:[%s2 + $0x8] sm:$0xf]
  %v49 = vlaneseq
  %v50 = vshrl.u32 %v49, 7
  %v51 = vsub.s32 0, %v50
  %v52 = vrot.slane %v45, %v51
  %v53 = vlaneseq
  %v54 = vshrl.u32 %v53, 7
  %v55 = vsub.s32 1, %v54
  %v56 = vrot.slane %v45, %v55
  %v57 = vlaneseq
  %v58 = vshrl.u32 %v57, 7
  %v59 = vsub.s32 2, %v58
  %v60 = vrot.slane %v45, %v59
  %v61 = vlaneseq
  %v62 = vshrl.u32 %v61, 7
  %v63 = vsub.s32 3, %v62
  %v64 = vrot.slane %v45, %v63
  %v65 = vlaneseq
  %v66 = vshrl.u32 %v65, 7
  %v67 = vsub.s32 4, %v66
  %v68 = vrot.slane %v45, %v67
  %v69 = vlaneseq
  %v70 = vshrl.u32 %v69, 7
  %v71 = vsub.s32 5, %v70
  %v72 = vrot.slane %v45, %v71
  %v73 = vlaneseq
  %v74 = vshrl.u32 %v73, 7
  %v75 = vsub.s32 6, %v74
  %v76 = vrot.slane %v45, %v75
  %v77 = vlaneseq
  %v78 = vshrl.u32 %v77, 7
  %v79 = vsub.s32 7, %v78
  %v80 = vrot.slane %v45, %v79
  %v81 = vlaneseq
  %v82 = vshrl.u32 %v81, 7
  %v83 = vsub.s32 0, %v82
  %v84 = vrot.slane %v46, %v83
  %v85 = vlaneseq
  %v86 = vshrl.u32 %v85, 7
  %v87 = vsub.s32 1, %v86
  %v88 = vrot.slane %v46, %v87
  %v89 = vlaneseq
  %v90 = vshrl.u32 %v89, 7
  %v91 = vsub.s32 2, %v90
  %v92 = vrot.slane %v46, %v91
  %v93 = vlaneseq
  %v94 = vshrl.u32 %v93, 7
  %v95 = vsub.s32 3, %v94
  %v96 = vrot.slane %v46, %v95
  %v111 = vunpack.c.l.b16 %v40
  %v112 = vunpack.c.l.b16 %v41
  %v113 = vlaneseq
  %v114 = vand.u32 %v113, 127
  %v115 = vlaneseq
  %v116 = vshrl.u32 %v115, 7
  %v117 = vsub.s32 %v114, %v116
  %v118 = vrot.slane %v111, %v117
  %v119 = vlaneseq
  %v120 = vshrl.u32 %v119, 7
  %v121 = vsub.s32 %v114, %v120
  %v122 = vrot.slane %v112, %v121
  %vm123 = vcmask 1041409
  %v124 = vsel %vm123, %v122, %v118
  %v125 = vpack.c.b16 %v124, %v124
  %v129 = vcombine.high %v42, %v42
  %v131 = vunpack.c.l.s4 1983009808
  %v132 = vunpack.c.0.s8 %v131
  %v133 = vlaneseq
  %v134 = vshrl.u32 %v133, 7
  %v135 = vsub.s32 %v132, %v134
  %v136 = vrot.slane %v42, %v135
  %v138 = vunpack.c.l.s4 1983009808
  %v139 = vunpack.c.0.s8 %v138
  %v140 = vlaneseq
  %v141 = vshrl.u32 %v140, 7
  %v142 = vsub.s32 %v139, %v141
  %v143 = vrot.slane %v129, %v142
  %v144 = vcombine.high %v136, %v136
  %v145 = vcombine.high %v143, %v143
  %v146 = vcombine.high %v43, %v43
  %v148 = vunpack.c.l.s4 1983009808
  %v149 = vunpack.c.0.s8 %v148
  %v150 = vlaneseq
  %v151 = vshrl.u32 %v150, 7
  %v152 = vsub.s32 %v149, %v151
  %v153 = vrot.slane %v43, %v152
  %v155 = vunpack.c.l.s4 1983009808
  %v156 = vunpack.c.0.s8 %v155
  %v157 = vlaneseq
  %v158 = vshrl.u32 %v157, 7
  %v159 = vsub.s32 %v156, %v158
  %v160 = vrot.slane %v146, %v159
  %v161 = vcombine.high %v153, %v153
  %v162 = vcombine.high %v160, %v160
  %v163 = vcombine.high %v44, %v44
  %v165 = vunpack.c.l.s4 1983009808
  %v166 = vunpack.c.0.s8 %v165
  %v167 = vlaneseq
  %v168 = vshrl.u32 %v167, 7
  %v169 = vsub.s32 %v166, %v168
  %v170 = vrot.slane %v44, %v169
  %v172 = vunpack.c.l.s4 1983009808
  %v173 = vunpack.c.0.s8 %v172
  %v174 = vlaneseq
  %v175 = vshrl.u32 %v174, 7
  %v176 = vsub.s32 %v173, %v175
  %v177 = vrot.slane %v163, %v176
  %v178 = vcombine.high %v170, %v170
  %v179 = vcombine.high %v177, %v177
  %vm180 = vcmask 31744
  %v182 = vsel %vm180, %v125, 0
  %vm184 = vcmask 1041408
  %v186 = vsel %vm184, %v136, 0
  %v189 = vsel %vm184, %v144, 0
  %v192 = vsel %vm184, %v143, 0
  %v195 = vsel %vm184, %v145, 0
  %v198 = vsel %vm184, %v153, 0
  %v201 = vsel %vm184, %v161, 0
  %v204 = vsel %vm184, %v160, 0
  %v207 = vsel %vm184, %v162, 0
  %v210 = vsel %vm184, %v170, 0
  %v213 = vsel %vm184, %v178, 0
  %v216 = vsel %vm184, %v177, 0
  %v219 = vsel %vm184, %v179, 0
  %221 = vmatprep.subr.bf16.mxu0 %v189
  %222 = vmatpush1.bf16.msra.mxu0 %v186
  %223 = vmatprep.subr.bf16.mxu0 0
  %224 = vmatpush1.bf16.msra.mxu0 0
  %225 = vmatprep.subr.bf16.mxu0 0
  %226 = vmatpush1.bf16.msra.mxu0 0
  %227 = vmatprep.subr.bf16.mxu0 0
  %228 = vmatpush1.bf16.msra.mxu0 0
  %229 = vmatprep.subr.bf16.mxu0 0
  %230 = vmatpush1.bf16.msra.mxu0 0
  %231 = vmatprep.subr.bf16.mxu0 0
  %232 = vmatpush1.bf16.msra.mxu0 0
  %233 = vmatprep.subr.bf16.mxu0 0
  %234 = vmatpush1.bf16.msra.mxu0 0
  %235 = vmatprep.subr.bf16.mxu0 0
  %236 = vmatpush1.bf16.msra.mxu0 0
  %237 = vmatprep.subr.bf16.mxu0 0
  %238 = vmatpush1.bf16.msra.mxu0 0
  %239 = vmatprep.subr.bf16.mxu0 0
  %240 = vmatpush1.bf16.msra.mxu0 0
  %241 = vmatprep.subr.bf16.mxu0 0
  %242 = vmatpush1.bf16.msra.mxu0 0
  %243 = vmatprep.subr.bf16.mxu0 0
  %244 = vmatpush1.bf16.msra.mxu0 0
  %245 = vmatprep.subr.bf16.mxu0 0
  %246 = vmatpush1.bf16.msra.mxu0 0
  %247 = vmatprep.subr.bf16.mxu0 0
  %248 = vmatpush1.bf16.msra.mxu0 0
  %249 = vmatprep.subr.bf16.mxu0 0
  %250 = vmatpush1.bf16.msra.mxu0 0
  %251 = vmatprep.subr.bf16.mxu0 0
  %252 = vmatpush1.bf16.msra.mxu0 0
  %253 = vmatprep.mubr.bf16.mxu0 0
  %254 = vmatmul.mubr.bf16.gmra.mrb[0].mxu0 %v182
  %v255 = vpop.f32.mrb[0].mxu0
  %v256 = vadd.f32 %v52, %v255
  %v257 = vpop.f32.mrb[0].mxu0
  %v258 = vadd.f32 %v56, %v257
  %v259 = vpop.f32.mrb[0].mxu0
  %v260 = vpop.f32.mrb[0].mxu0
  %261 = vdwg.mxu0
  %262 = vmatprep.subr.bf16.mxu0 %v195
  %263 = vmatpush1.bf16.msra.mxu0 %v192
  %264 = vmatprep.subr.bf16.mxu0 0
  %265 = vmatpush1.bf16.msra.mxu0 0
  %266 = vmatprep.subr.bf16.mxu0 0
  %267 = vmatpush1.bf16.msra.mxu0 0
  %268 = vmatprep.subr.bf16.mxu0 0
  %269 = vmatpush1.bf16.msra.mxu0 0
  %270 = vmatprep.subr.bf16.mxu0 0
  %271 = vmatpush1.bf16.msra.mxu0 0
  %272 = vmatprep.subr.bf16.mxu0 0
  %273 = vmatpush1.bf16.msra.mxu0 0
  %274 = vmatprep.subr.bf16.mxu0 0
  %275 = vmatpush1.bf16.msra.mxu0 0
  %276 = vmatprep.subr.bf16.mxu0 0
  %277 = vmatpush1.bf16.msra.mxu0 0
  %278 = vmatprep.subr.bf16.mxu0 0
  %279 = vmatpush1.bf16.msra.mxu0 0
  %280 = vmatprep.subr.bf16.mxu0 0
  %281 = vmatpush1.bf16.msra.mxu0 0
  %282 = vmatprep.subr.bf16.mxu0 0
  %283 = vmatpush1.bf16.msra.mxu0 0
  %284 = vmatprep.subr.bf16.mxu0 0
  %285 = vmatpush1.bf16.msra.mxu0 0
  %286 = vmatprep.subr.bf16.mxu0 0
  %287 = vmatpush1.bf16.msra.mxu0 0
  %288 = vmatprep.subr.bf16.mxu0 0
  %289 = vmatpush1.bf16.msra.mxu0 0
  %290 = vmatprep.subr.bf16.mxu0 0
  %291 = vmatpush1.bf16.msra.mxu0 0
  %292 = vmatprep.subr.bf16.mxu0 0
  %293 = vmatpush1.bf16.msra.mxu0 0
  %294 = vmatprep.mubr.bf16.mxu0 0
  %295 = vmatmul.mubr.bf16.gmra.mrb[0].mxu0 %v182
  %v296 = vpop.f32.mrb[0].mxu0
  %v297 = vadd.f32 %v60, %v296
  %v298 = vpop.f32.mrb[0].mxu0
  %v299 = vadd.f32 %v64, %v298
  %v300 = vpop.f32.mrb[0].mxu0
  %v301 = vpop.f32.mrb[0].mxu0
  %302 = vdwg.mxu0
  %303 = vmatprep.subr.bf16.mxu0 %v201
  %304 = vmatpush1.bf16.msra.mxu0 %v198
  %305 = vmatprep.subr.bf16.mxu0 0
  %306 = vmatpush1.bf16.msra.mxu0 0
  %307 = vmatprep.subr.bf16.mxu0 0
  %308 = vmatpush1.bf16.msra.mxu0 0
  %309 = vmatprep.subr.bf16.mxu0 0
  %310 = vmatpush1.bf16.msra.mxu0 0
  %311 = vmatprep.subr.bf16.mxu0 0
  %312 = vmatpush1.bf16.msra.mxu0 0
  %313 = vmatprep.subr.bf16.mxu0 0
  %314 = vmatpush1.bf16.msra.mxu0 0
  %315 = vmatprep.subr.bf16.mxu0 0
  %316 = vmatpush1.bf16.msra.mxu0 0
  %317 = vmatprep.subr.bf16.mxu0 0
  %318 = vmatpush1.bf16.msra.mxu0 0
  %319 = vmatprep.subr.bf16.mxu0 0
  %320 = vmatpush1.bf16.msra.mxu0 0
  %321 = vmatprep.subr.bf16.mxu0 0
  %322 = vmatpush1.bf16.msra.mxu0 0
  %323 = vmatprep.subr.bf16.mxu0 0
  %324 = vmatpush1.bf16.msra.mxu0 0
  %325 = vmatprep.subr.bf16.mxu0 0
  %326 = vmatpush1.bf16.msra.mxu0 0
  %327 = vmatprep.subr.bf16.mxu0 0
  %328 = vmatpush1.bf16.msra.mxu0 0
  %329 = vmatprep.subr.bf16.mxu0 0
  %330 = vmatpush1.bf16.msra.mxu0 0
  %331 = vmatprep.subr.bf16.mxu0 0
  %332 = vmatpush1.bf16.msra.mxu0 0
  %333 = vmatprep.subr.bf16.mxu0 0
  %334 = vmatpush1.bf16.msra.mxu0 0
  %335 = vmatprep.mubr.bf16.mxu0 0
  %336 = vmatmul.mubr.bf16.gmra.mrb[0].mxu0 %v182
  %v337 = vpop.f32.mrb[0].mxu0
  %v338 = vadd.f32 %v68, %v337
  %v339 = vpop.f32.mrb[0].mxu0
  %v340 = vadd.f32 %v72, %v339
  %v341 = vpop.f32.mrb[0].mxu0
  %v342 = vpop.f32.mrb[0].mxu0
  %343 = vdwg.mxu0
  %344 = vmatprep.subr.bf16.mxu0 %v207
  %345 = vmatpush1.bf16.msra.mxu0 %v204
  %346 = vmatprep.subr.bf16.mxu0 0
  %347 = vmatpush1.bf16.msra.mxu0 0
  %348 = vmatprep.subr.bf16.mxu0 0
  %349 = vmatpush1.bf16.msra.mxu0 0
  %350 = vmatprep.subr.bf16.mxu0 0
  %351 = vmatpush1.bf16.msra.mxu0 0
  %352 = vmatprep.subr.bf16.mxu0 0
  %353 = vmatpush1.bf16.msra.mxu0 0
  %354 = vmatprep.subr.bf16.mxu0 0
  %355 = vmatpush1.bf16.msra.mxu0 0
  %356 = vmatprep.subr.bf16.mxu0 0
  %357 = vmatpush1.bf16.msra.mxu0 0
  %358 = vmatprep.subr.bf16.mxu0 0
  %359 = vmatpush1.bf16.msra.mxu0 0
  %360 = vmatprep.subr.bf16.mxu0 0
  %361 = vmatpush1.bf16.msra.mxu0 0
  %362 = vmatprep.subr.bf16.mxu0 0
  %363 = vmatpush1.bf16.msra.mxu0 0
  %364 = vmatprep.subr.bf16.mxu0 0
  %365 = vmatpush1.bf16.msra.mxu0 0
  %366 = vmatprep.subr.bf16.mxu0 0
  %367 = vmatpush1.bf16.msra.mxu0 0
  %368 = vmatprep.subr.bf16.mxu0 0
  %369 = vmatpush1.bf16.msra.mxu0 0
  %370 = vmatprep.subr.bf16.mxu0 0
  %371 = vmatpush1.bf16.msra.mxu0 0
  %372 = vmatprep.subr.bf16.mxu0 0
  %373 = vmatpush1.bf16.msra.mxu0 0
  %374 = vmatprep.subr.bf16.mxu0 0
  %375 = vmatpush1.bf16.msra.mxu0 0
  %376 = vmatprep.mubr.bf16.mxu0 0
  %377 = vmatmul.mubr.bf16.gmra.mrb[0].mxu0 %v182
  %v378 = vpop.f32.mrb[0].mxu0
  %v379 = vadd.f32 %v76, %v378
  %v380 = vpop.f32.mrb[0].mxu0
  %v381 = vadd.f32 %v80, %v380
  %v382 = vpop.f32.mrb[0].mxu0
  %v383 = vpop.f32.mrb[0].mxu0
  %384 = vdwg.mxu0
  %385 = vmatprep.subr.bf16.mxu0 %v213
  %386 = vmatpush1.bf16.msra.mxu0 %v210
  %387 = vmatprep.subr.bf16.mxu0 0
  %388 = vmatpush1.bf16.msra.mxu0 0
  %389 = vmatprep.subr.bf16.mxu0 0
  %390 = vmatpush1.bf16.msra.mxu0 0
  %391 = vmatprep.subr.bf16.mxu0 0
  %392 = vmatpush1.bf16.msra.mxu0 0
  %393 = vmatprep.subr.bf16.mxu0 0
  %394 = vmatpush1.bf16.msra.mxu0 0
  %395 = vmatprep.subr.bf16.mxu0 0
  %396 = vmatpush1.bf16.msra.mxu0 0
  %397 = vmatprep.subr.bf16.mxu0 0
  %398 = vmatpush1.bf16.msra.mxu0 0
  %399 = vmatprep.subr.bf16.mxu0 0
  %400 = vmatpush1.bf16.msra.mxu0 0
  %401 = vmatprep.subr.bf16.mxu0 0
  %402 = vmatpush1.bf16.msra.mxu0 0
  %403 = vmatprep.subr.bf16.mxu0 0
  %404 = vmatpush1.bf16.msra.mxu0 0
  %405 = vmatprep.subr.bf16.mxu0 0
  %406 = vmatpush1.bf16.msra.mxu0 0
  %407 = vmatprep.subr.bf16.mxu0 0
  %408 = vmatpush1.bf16.msra.mxu0 0
  %409 = vmatprep.subr.bf16.mxu0 0
  %410 = vmatpush1.bf16.msra.mxu0 0
  %411 = vmatprep.subr.bf16.mxu0 0
  %412 = vmatpush1.bf16.msra.mxu0 0
  %413 = vmatprep.subr.bf16.mxu0 0
  %414 = vmatpush1.bf16.msra.mxu0 0
  %415 = vmatprep.subr.bf16.mxu0 0
  %416 = vmatpush1.bf16.msra.mxu0 0
  %417 = vmatprep.mubr.bf16.mxu0 0
  %418 = vmatmul.mubr.bf16.gmra.mrb[0].mxu0 %v182
  %v419 = vpop.f32.mrb[0].mxu0
  %v420 = vadd.f32 %v84, %v419
  %v421 = vpop.f32.mrb[0].mxu0
  %v422 = vadd.f32 %v88, %v421
  %v423 = vpop.f32.mrb[0].mxu0
  %v424 = vpop.f32.mrb[0].mxu0
  %425 = vdwg.mxu0
  %426 = vmatprep.subr.bf16.mxu0 %v219
  %427 = vmatpush1.bf16.msra.mxu0 %v216
  %428 = vmatprep.subr.bf16.mxu0 0
  %429 = vmatpush1.bf16.msra.mxu0 0
  %430 = vmatprep.subr.bf16.mxu0 0
  %431 = vmatpush1.bf16.msra.mxu0 0
  %432 = vmatprep.subr.bf16.mxu0 0
  %433 = vmatpush1.bf16.msra.mxu0 0
  %434 = vmatprep.subr.bf16.mxu0 0
  %435 = vmatpush1.bf16.msra.mxu0 0
  %436 = vmatprep.subr.bf16.mxu0 0
  %437 = vmatpush1.bf16.msra.mxu0 0
  %438 = vmatprep.subr.bf16.mxu0 0
  %439 = vmatpush1.bf16.msra.mxu0 0
  %440 = vmatprep.subr.bf16.mxu0 0
  %441 = vmatpush1.bf16.msra.mxu0 0
  %442 = vmatprep.subr.bf16.mxu0 0
  %443 = vmatpush1.bf16.msra.mxu0 0
  %444 = vmatprep.subr.bf16.mxu0 0
  %445 = vmatpush1.bf16.msra.mxu0 0
  %446 = vmatprep.subr.bf16.mxu0 0
  %447 = vmatpush1.bf16.msra.mxu0 0
  %448 = vmatprep.subr.bf16.mxu0 0
  %449 = vmatpush1.bf16.msra.mxu0 0
  %450 = vmatprep.subr.bf16.mxu0 0
  %451 = vmatpush1.bf16.msra.mxu0 0
  %452 = vmatprep.subr.bf16.mxu0 0
  %453 = vmatpush1.bf16.msra.mxu0 0
  %454 = vmatprep.subr.bf16.mxu0 0
  %455 = vmatpush1.bf16.msra.mxu0 0
  %456 = vmatprep.subr.bf16.mxu0 0
  %457 = vmatpush1.bf16.msra.mxu0 0
  %458 = vmatprep.mubr.bf16.mxu0 0
  %459 = vmatmul.mubr.bf16.gmra.mrb[0].mxu0 %v182
  %v460 = vpop.f32.mrb[0].mxu0
  %v461 = vadd.f32 %v92, %v460
  %v462 = vpop.f32.mrb[0].mxu0
  %v463 = vadd.f32 %v96, %v462
  %v464 = vpop.f32.mrb[0].mxu0
  %v465 = vpop.f32.mrb[0].mxu0
  %466 = vdwg.mxu0
  %v467 = vpack.c.bf16 %v256, %v256
  %v468 = vpack.c.bf16 %v258, %v258
  %v469 = vpack.c.bf16 %v297, %v297
  %v470 = vpack.c.bf16 %v299, %v299
  %v471 = vpack.c.bf16 %v338, %v338
  %v472 = vpack.c.bf16 %v340, %v340
  %v473 = vpack.c.bf16 %v379, %v379
  %v474 = vpack.c.bf16 %v381, %v381
  %v475 = vpack.c.bf16 %v420, %v420
  %v476 = vpack.c.bf16 %v422, %v422
  %v477 = vpack.c.bf16 %v461, %v461
  %v478 = vpack.c.bf16 %v463, %v463
  %v479 = vld [vmem:[%s3] sm:$0xf]
  %v480 = vld [vmem:[%s3 + $0x4] sm:$0xf]
  %v481 = vld [vmem:[%s3 + $0x8] sm:$0xf]
  %v482 = vld [vmem:[%s3 + $0xc] sm:$0xf]
  %v483 = vld [vmem:[%s3 + $0x10] sm:$0xf]
  %v484 = vld [vmem:[%s3 + $0x14] sm:$0xf]
  %v485 = vld [vmem:[%s3 + $0x18] sm:$0xf]
  %v486 = vld [vmem:[%s3 + $0x1c] sm:$0xf]
  %v487 = vld [vmem:[%s3 + $0x20] sm:$0xf]
  %v488 = vld [vmem:[%s3 + $0x24] sm:$0xf]
  %v489 = vld [vmem:[%s3 + $0x28] sm:$0xf]
  %v490 = vld [vmem:[%s3 + $0x2c] sm:$0xf]
  %v491 = vld [vmem:[%s3 + $0x30] sm:$0xf]
  %v492 = vld [vmem:[%s3 + $0x34] sm:$0xf]
  %v493 = vld [vmem:[%s3 + $0x38] sm:$0xf]
  %v494 = vld [vmem:[%s3 + $0x3c] sm:$0xf]
  %v495 = vld [vmem:[%s3 + $0x40] sm:$0xf]
  %v496 = vld [vmem:[%s3 + $0x44] sm:$0xf]
  %v497 = vld [vmem:[%s3 + $0x48] sm:$0xf]
  %v498 = vld [vmem:[%s3 + $0x4c] sm:$0xf]
  %v499 = vld [vmem:[%s3 + $0x50] sm:$0xf]
  %v500 = vld [vmem:[%s3 + $0x54] sm:$0xf]
  %v501 = vld [vmem:[%s3 + $0x58] sm:$0xf]
  %v502 = vld [vmem:[%s3 + $0x5c] sm:$0xf]
  %v503 = vld [vmem:[%s3 + $0x60] sm:$0xf]
  %v504 = vld [vmem:[%s3 + $0x64] sm:$0xf]
  %v505 = vld [vmem:[%s3 + $0x68] sm:$0xf]
  %v506 = vld [vmem:[%s3 + $0x6c] sm:$0xf]
  %v507 = vld [vmem:[%s3 + $0x70] sm:$0xf]
  %v508 = vld [vmem:[%s3 + $0x74] sm:$0xf]
  %v509 = vld [vmem:[%s3 + $0x78] sm:$0xf]
  %v510 = vld [vmem:[%s3 + $0x7c] sm:$0xf]
  %v511 = vld [vmem:[%s3 + $0x80] sm:$0xf]
  %v512 = vld [vmem:[%s3 + $0x84] sm:$0xf]
  %v513 = vld [vmem:[%s3 + $0x88] sm:$0xf]
  %v514 = vld [vmem:[%s3 + $0x8c] sm:$0xf]
  %v515 = vld [vmem:[%s3 + $0x90] sm:$0xf]
  %v516 = vld [vmem:[%s3 + $0x94] sm:$0xf]
  %v517 = vld [vmem:[%s3 + $0x98] sm:$0xf]
  %v518 = vld [vmem:[%s3 + $0x9c] sm:$0xf]
  %v519 = vld [vmem:[%s3 + $0xa0] sm:$0xf]
  %v520 = vld [vmem:[%s3 + $0xa4] sm:$0xf]
  %v521 = vld [vmem:[%s3 + $0xa8] sm:$0xf]
  %v522 = vld [vmem:[%s3 + $0xac] sm:$0xf]
  %v523 = vld [vmem:[%s3 + $0xb0] sm:$0xf]
  %v524 = vld [vmem:[%s3 + $0xb4] sm:$0xf]
  %v525 = vld [vmem:[%s3 + $0xb8] sm:$0xf]
  %v526 = vld [vmem:[%s3 + $0xbc] sm:$0xf]
  %v527 = vld [vmem:[%s3 + $0xc0] sm:$0xf]
  %v528 = vld [vmem:[%s3 + $0xc4] sm:$0xf]
  %v529 = vld [vmem:[%s3 + $0xc8] sm:$0xf]
  %v530 = vld [vmem:[%s3 + $0xcc] sm:$0xf]
  %v531 = vld [vmem:[%s3 + $0xd0] sm:$0xf]
  %v532 = vld [vmem:[%s3 + $0xd4] sm:$0xf]
  %v533 = vld [vmem:[%s3 + $0xd8] sm:$0xf]
  %v534 = vld [vmem:[%s3 + $0xdc] sm:$0xf]
  %v535 = vld [vmem:[%s3 + $0xe0] sm:$0xf]
  %v536 = vld [vmem:[%s3 + $0xe4] sm:$0xf]
  %v537 = vld [vmem:[%s3 + $0xe8] sm:$0xf]
  %v538 = vld [vmem:[%s3 + $0xec] sm:$0xf]
  %v539 = vld [vmem:[%s3 + $0xf0] sm:$0xf]
  %v540 = vld [vmem:[%s3 + $0xf4] sm:$0xf]
  %v541 = vld [vmem:[%s3 + $0xf8] sm:$0xf]
  %v542 = vld [vmem:[%s3 + $0xfc] sm:$0xf]
  %v543 = vld [vmem:[%s3 + $0x100] sm:$0xf]
  %v544 = vld [vmem:[%s3 + $0x104] sm:$0xf]
  %v545 = vld [vmem:[%s3 + $0x108] sm:$0xf]
  %v546 = vld [vmem:[%s3 + $0x10c] sm:$0xf]
  %v547 = vld [vmem:[%s3 + $0x110] sm:$0xf]
  %v548 = vld [vmem:[%s3 + $0x114] sm:$0xf]
  %v549 = vld [vmem:[%s3 + $0x118] sm:$0xf]
  %v550 = vld [vmem:[%s3 + $0x11c] sm:$0xf]
  %v551 = vld [vmem:[%s3 + $0x120] sm:$0xf]
  %v552 = vld [vmem:[%s3 + $0x124] sm:$0xf]
  %v553 = vld [vmem:[%s3 + $0x128] sm:$0xf]
  %v554 = vld [vmem:[%s3 + $0x12c] sm:$0xf]
  %v555 = vld [vmem:[%s3 + $0x130] sm:$0xf]
  %v556 = vld [vmem:[%s3 + $0x134] sm:$0xf]
  %v557 = vld [vmem:[%s3 + $0x138] sm:$0xf]
  %v558 = vld [vmem:[%s3 + $0x13c] sm:$0xf]
  %v559 = vld [vmem:[%s3 + $0x140] sm:$0xf]
  %v560 = vld [vmem:[%s3 + $0x144] sm:$0xf]
  %v561 = vld [vmem:[%s3 + $0x148] sm:$0xf]
  %v562 = vld [vmem:[%s3 + $0x14c] sm:$0xf]
  %v563 = vld [vmem:[%s3 + $0x150] sm:$0xf]
  %v564 = vld [vmem:[%s3 + $0x154] sm:$0xf]
  %v565 = vld [vmem:[%s3 + $0x158] sm:$0xf]
  %v566 = vld [vmem:[%s3 + $0x15c] sm:$0xf]
  %v567 = vld [vmem:[%s3 + $0x160] sm:$0xf]
  %v568 = vld [vmem:[%s3 + $0x164] sm:$0xf]
  %v569 = vld [vmem:[%s3 + $0x168] sm:$0xf]
  %v570 = vld [vmem:[%s3 + $0x16c] sm:$0xf]
  %v571 = vld [vmem:[%s3 + $0x170] sm:$0xf]
  %v572 = vld [vmem:[%s3 + $0x174] sm:$0xf]
  %v573 = vld [vmem:[%s3 + $0x178] sm:$0xf]
  %v574 = vld [vmem:[%s3 + $0x17c] sm:$0xf]
  %v575 = vld [vmem:[%s3 + $0x180] sm:$0xf]
  %v576 = vld [vmem:[%s3 + $0x184] sm:$0xf]
  %v577 = vld [vmem:[%s3 + $0x188] sm:$0xf]
  %v578 = vld [vmem:[%s3 + $0x18c] sm:$0xf]
  %v579 = vld [vmem:[%s3 + $0x190] sm:$0xf]
  %v580 = vld [vmem:[%s3 + $0x194] sm:$0xf]
  %v581 = vld [vmem:[%s3 + $0x198] sm:$0xf]
  %v582 = vld [vmem:[%s3 + $0x19c] sm:$0xf]
  %v583 = vld [vmem:[%s3 + $0x1a0] sm:$0xf]
  %v584 = vld [vmem:[%s3 + $0x1a4] sm:$0xf]
  %v585 = vld [vmem:[%s3 + $0x1a8] sm:$0xf]
  %v586 = vld [vmem:[%s3 + $0x1ac] sm:$0xf]
  %v587 = vld [vmem:[%s3 + $0x1b0] sm:$0xf]
  %v588 = vld [vmem:[%s3 + $0x1b4] sm:$0xf]
  %v589 = vld [vmem:[%s3 + $0x1b8] sm:$0xf]
  %v590 = vld [vmem:[%s3 + $0x1bc] sm:$0xf]
  %v591 = vld [vmem:[%s3 + $0x1c0] sm:$0xf]
  %v592 = vld [vmem:[%s3 + $0x1c4] sm:$0xf]
  %v593 = vld [vmem:[%s3 + $0x1c8] sm:$0xf]
  %v594 = vld [vmem:[%s3 + $0x1cc] sm:$0xf]
  %v595 = vld [vmem:[%s3 + $0x1d0] sm:$0xf]
  %v596 = vld [vmem:[%s3 + $0x1d4] sm:$0xf]
  %v597 = vld [vmem:[%s3 + $0x1d8] sm:$0xf]
  %v598 = vld [vmem:[%s3 + $0x1dc] sm:$0xf]
  %v599 = vld [vmem:[%s3 + $0x1e0] sm:$0xf]
  %v600 = vld [vmem:[%s3 + $0x1e4] sm:$0xf]
  %v601 = vld [vmem:[%s3 + $0x1e8] sm:$0xf]
  %v602 = vld [vmem:[%s3 + $0x1ec] sm:$0xf]
  %v603 = vld [vmem:[%s3 + $0x1f0] sm:$0xf]
  %v604 = vld [vmem:[%s3 + $0x1f4] sm:$0xf]
  %v605 = vld [vmem:[%s3 + $0x1f8] sm:$0xf]
  %v606 = vld [vmem:[%s3 + $0x1fc] sm:$0xf]
  %v607 = vld [vmem:[%s3 + $0x200] sm:$0xf]
  %v608 = vld [vmem:[%s3 + $0x204] sm:$0xf]
  %v609 = vld [vmem:[%s3 + $0x208] sm:$0xf]
  %v610 = vld [vmem:[%s3 + $0x20c] sm:$0xf]
  %v611 = vld [vmem:[%s3 + $0x210] sm:$0xf]
  %v612 = vld [vmem:[%s3 + $0x214] sm:$0xf]
  %v613 = vld [vmem:[%s3 + $0x218] sm:$0xf]
  %v614 = vld [vmem:[%s3 + $0x21c] sm:$0xf]
  %v615 = vld [vmem:[%s3 + $0x220] sm:$0xf]
  %v616 = vld [vmem:[%s3 + $0x224] sm:$0xf]
  %v617 = vld [vmem:[%s3 + $0x228] sm:$0xf]
  %v618 = vld [vmem:[%s3 + $0x22c] sm:$0xf]
  %v619 = vld [vmem:[%s3 + $0x230] sm:$0xf]
  %v620 = vld [vmem:[%s3 + $0x234] sm:$0xf]
  %v621 = vld [vmem:[%s3 + $0x238] sm:$0xf]
  %v622 = vld [vmem:[%s3 + $0x23c] sm:$0xf]
  %v623 = vld [vmem:[%s3 + $0x240] sm:$0xf]
  %v624 = vld [vmem:[%s3 + $0x244] sm:$0xf]
  %v625 = vld [vmem:[%s3 + $0x248] sm:$0xf]
  %v626 = vld [vmem:[%s3 + $0x24c] sm:$0xf]
  %v627 = vld [vmem:[%s3 + $0x250] sm:$0xf]
  %v628 = vld [vmem:[%s3 + $0x254] sm:$0xf]
  %v629 = vld [vmem:[%s3 + $0x258] sm:$0xf]
  %v630 = vld [vmem:[%s3 + $0x25c] sm:$0xf]
  %v631 = vld [vmem:[%s3 + $0x260] sm:$0xf]
  %v632 = vld [vmem:[%s3 + $0x264] sm:$0xf]
  %v633 = vld [vmem:[%s3 + $0x268] sm:$0xf]
  %v634 = vld [vmem:[%s3 + $0x26c] sm:$0xf]
  %v635 = vld [vmem:[%s3 + $0x270] sm:$0xf]
  %v636 = vld [vmem:[%s3 + $0x274] sm:$0xf]
  %v637 = vld [vmem:[%s3 + $0x278] sm:$0xf]
  %v638 = vld [vmem:[%s3 + $0x27c] sm:$0xf]
  %v639 = vld [vmem:[%s3 + $0x280] sm:$0xf]
  %v640 = vld [vmem:[%s3 + $0x284] sm:$0xf]
  %v641 = vld [vmem:[%s3 + $0x288] sm:$0xf]
  %v642 = vld [vmem:[%s3 + $0x28c] sm:$0xf]
  %v643 = vld [vmem:[%s3 + $0x290] sm:$0xf]
  %v644 = vld [vmem:[%s3 + $0x294] sm:$0xf]
  %v645 = vld [vmem:[%s3 + $0x298] sm:$0xf]
  %v646 = vld [vmem:[%s3 + $0x29c] sm:$0xf]
  %v647 = vld [vmem:[%s3 + $0x2a0] sm:$0xf]
  %v648 = vld [vmem:[%s3 + $0x2a4] sm:$0xf]
  %v649 = vld [vmem:[%s3 + $0x2a8] sm:$0xf]
  %v650 = vld [vmem:[%s3 + $0x2ac] sm:$0xf]
  %v651 = vld [vmem:[%s3 + $0x2b0] sm:$0xf]
  %v652 = vld [vmem:[%s3 + $0x2b4] sm:$0xf]
  %v653 = vld [vmem:[%s3 + $0x2b8] sm:$0xf]
  %v654 = vld [vmem:[%s3 + $0x2bc] sm:$0xf]
  %v655 = vld [vmem:[%s3 + $0x2c0] sm:$0xf]
  %v656 = vld [vmem:[%s3 + $0x2c4] sm:$0xf]
  %v657 = vld [vmem:[%s3 + $0x2c8] sm:$0xf]
  %v658 = vld [vmem:[%s3 + $0x2cc] sm:$0xf]
  %v659 = vld [vmem:[%s3 + $0x2d0] sm:$0xf]
  %v660 = vld [vmem:[%s3 + $0x2d4] sm:$0xf]
  %v661 = vld [vmem:[%s3 + $0x2d8] sm:$0xf]
  %v662 = vld [vmem:[%s3 + $0x2dc] sm:$0xf]
  %v663 = vld [vmem:[%s3 + $0x2e0] sm:$0xf]
  %v664 = vld [vmem:[%s3 + $0x2e4] sm:$0xf]
  %v665 = vld [vmem:[%s3 + $0x2e8] sm:$0xf]
  %v666 = vld [vmem:[%s3 + $0x2ec] sm:$0xf]
  %v667 = vld [vmem:[%s3 + $0x2f0] sm:$0xf]
  %v668 = vld [vmem:[%s3 + $0x2f4] sm:$0xf]
  %v669 = vld [vmem:[%s3 + $0x2f8] sm:$0xf]
  %v670 = vld [vmem:[%s3 + $0x2fc] sm:$0xf]
  %v671 = vld [vmem:[%s4] sm:$0x1]
  %v673 = vlaneseq
  %v674 = vshrl.u32 %v673, 7
  %v675 = vsub.s32 0, %v674
  %v676 = vrot.slane %v671, %v675
  %v870 = vunpack.c.l.b16 %v479
  %v871 = vunpack.c.l.b16 %v480
  %v872 = vunpack.c.l.b16 %v481
  %v873 = vunpack.c.l.b16 %v482
  %v874 = vunpack.c.l.b16 %v483
  %v875 = vunpack.c.l.b16 %v484
  %v876 = vunpack.c.l.b16 %v485
  %v877 = vunpack.c.l.b16 %v486
  %v878 = vunpack.c.l.b16 %v487
  %v879 = vunpack.c.l.b16 %v488
  %v880 = vunpack.c.l.b16 %v489
  %v881 = vunpack.c.l.b16 %v490
  %v882 = vunpack.c.l.b16 %v491
  %v883 = vunpack.c.l.b16 %v492
  %v884 = vunpack.c.l.b16 %v493
  %v885 = vunpack.c.l.b16 %v494
  %v886 = vunpack.c.l.b16 %v495
  %v887 = vunpack.c.l.b16 %v496
  %v888 = vunpack.c.l.b16 %v497
  %v889 = vunpack.c.l.b16 %v498
  %v890 = vunpack.c.l.b16 %v499
  %v891 = vunpack.c.l.b16 %v500
  %v892 = vunpack.c.l.b16 %v501
  %v893 = vunpack.c.l.b16 %v502
  %v894 = vunpack.c.l.b16 %v503
  %v895 = vunpack.c.l.b16 %v504
  %v896 = vunpack.c.l.b16 %v505
  %v897 = vunpack.c.l.b16 %v506
  %v898 = vunpack.c.l.b16 %v507
  %v899 = vunpack.c.l.b16 %v508
  %v900 = vunpack.c.l.b16 %v509
  %v901 = vunpack.c.l.b16 %v510
  %v902 = vunpack.c.l.b16 %v511
  %v903 = vunpack.c.l.b16 %v512
  %v904 = vunpack.c.l.b16 %v513
  %v905 = vunpack.c.l.b16 %v514
  %v906 = vunpack.c.l.b16 %v515
  %v907 = vunpack.c.l.b16 %v516
  %v908 = vunpack.c.l.b16 %v517
  %v909 = vunpack.c.l.b16 %v518
  %v910 = vunpack.c.l.b16 %v519
  %v911 = vunpack.c.l.b16 %v520
  %v912 = vunpack.c.l.b16 %v521
  %v913 = vunpack.c.l.b16 %v522
  %v914 = vunpack.c.l.b16 %v523
  %v915 = vunpack.c.l.b16 %v524
  %v916 = vunpack.c.l.b16 %v525
  %v917 = vunpack.c.l.b16 %v526
  %v918 = vunpack.c.l.b16 %v527
  %v919 = vunpack.c.l.b16 %v528
  %v920 = vunpack.c.l.b16 %v529
  %v921 = vunpack.c.l.b16 %v530
  %v922 = vunpack.c.l.b16 %v531
  %v923 = vunpack.c.l.b16 %v532
  %v924 = vunpack.c.l.b16 %v533
  %v925 = vunpack.c.l.b16 %v534
  %v926 = vunpack.c.l.b16 %v535
  %v927 = vunpack.c.l.b16 %v536
  %v928 = vunpack.c.l.b16 %v537
  %v929 = vunpack.c.l.b16 %v538
  %v930 = vunpack.c.l.b16 %v539
  %v931 = vunpack.c.l.b16 %v540
  %v932 = vunpack.c.l.b16 %v541
  %v933 = vunpack.c.l.b16 %v542
  %v934 = vunpack.c.l.b16 %v543
  %v935 = vunpack.c.l.b16 %v544
  %v936 = vunpack.c.l.b16 %v545
  %v937 = vunpack.c.l.b16 %v546
  %v938 = vunpack.c.l.b16 %v547
  %v939 = vunpack.c.l.b16 %v548
  %v940 = vunpack.c.l.b16 %v549
  %v941 = vunpack.c.l.b16 %v550
  %v942 = vunpack.c.l.b16 %v551
  %v943 = vunpack.c.l.b16 %v552
  %v944 = vunpack.c.l.b16 %v553
  %v945 = vunpack.c.l.b16 %v554
  %v946 = vunpack.c.l.b16 %v555
  %v947 = vunpack.c.l.b16 %v556
  %v948 = vunpack.c.l.b16 %v557
  %v949 = vunpack.c.l.b16 %v558
  %v950 = vunpack.c.l.b16 %v559
  %v951 = vunpack.c.l.b16 %v560
  %v952 = vunpack.c.l.b16 %v561
  %v953 = vunpack.c.l.b16 %v562
  %v954 = vunpack.c.l.b16 %v563
  %v955 = vunpack.c.l.b16 %v564
  %v956 = vunpack.c.l.b16 %v565
  %v957 = vunpack.c.l.b16 %v566
  %v958 = vunpack.c.l.b16 %v567
  %v959 = vunpack.c.l.b16 %v568
  %v960 = vunpack.c.l.b16 %v569
  %v961 = vunpack.c.l.b16 %v570
  %v962 = vunpack.c.l.b16 %v571
  %v963 = vunpack.c.l.b16 %v572
  %v964 = vunpack.c.l.b16 %v573
  %v965 = vunpack.c.l.b16 %v574
  %v966 = vunpack.c.l.b16 %v575
  %v967 = vunpack.c.l.b16 %v576
  %v968 = vunpack.c.l.b16 %v577
  %v969 = vunpack.c.l.b16 %v578
  %v970 = vunpack.c.l.b16 %v579
  %v971 = vunpack.c.l.b16 %v580
  %v972 = vunpack.c.l.b16 %v581
  %v973 = vunpack.c.l.b16 %v582
  %v974 = vunpack.c.l.b16 %v583
  %v975 = vunpack.c.l.b16 %v584
  %v976 = vunpack.c.l.b16 %v585
  %v977 = vunpack.c.l.b16 %v586
  %v978 = vunpack.c.l.b16 %v587
  %v979 = vunpack.c.l.b16 %v588
  %v980 = vunpack.c.l.b16 %v589
  %v981 = vunpack.c.l.b16 %v590
  %v982 = vunpack.c.l.b16 %v591
  %v983 = vunpack.c.l.b16 %v592
  %v984 = vunpack.c.l.b16 %v593
  %v985 = vunpack.c.l.b16 %v594
  %v986 = vunpack.c.l.b16 %v595
  %v987 = vunpack.c.l.b16 %v596
  %v988 = vunpack.c.l.b16 %v597
  %v989 = vunpack.c.l.b16 %v598
  %v990 = vunpack.c.l.b16 %v599
  %v991 = vunpack.c.l.b16 %v600
  %v992 = vunpack.c.l.b16 %v601
  %v993 = vunpack.c.l.b16 %v602
  %v994 = vunpack.c.l.b16 %v603
  %v995 = vunpack.c.l.b16 %v604
  %v996 = vunpack.c.l.b16 %v605
  %v997 = vunpack.c.l.b16 %v606
  %v998 = vunpack.c.l.b16 %v607
  %v999 = vunpack.c.l.b16 %v608
  %v1000 = vunpack.c.l.b16 %v609
  %v1001 = vunpack.c.l.b16 %v610
  %v1002 = vunpack.c.l.b16 %v611
  %v1003 = vunpack.c.l.b16 %v612
  %v1004 = vunpack.c.l.b16 %v613
  %v1005 = vunpack.c.l.b16 %v614
  %v1006 = vunpack.c.l.b16 %v615
  %v1007 = vunpack.c.l.b16 %v616
  %v1008 = vunpack.c.l.b16 %v617
  %v1009 = vunpack.c.l.b16 %v618
  %v1010 = vunpack.c.l.b16 %v619
  %v1011 = vunpack.c.l.b16 %v620
  %v1012 = vunpack.c.l.b16 %v621
  %v1013 = vunpack.c.l.b16 %v622
  %v1014 = vunpack.c.l.b16 %v623
  %v1015 = vunpack.c.l.b16 %v624
  %v1016 = vunpack.c.l.b16 %v625
  %v1017 = vunpack.c.l.b16 %v626
  %v1018 = vunpack.c.l.b16 %v627
  %v1019 = vunpack.c.l.b16 %v628
  %v1020 = vunpack.c.l.b16 %v629
  %v1021 = vunpack.c.l.b16 %v630
  %v1022 = vunpack.c.l.b16 %v631
  %v1023 = vunpack.c.l.b16 %v632
  %v1024 = vunpack.c.l.b16 %v633
  %v1025 = vunpack.c.l.b16 %v634
  %v1026 = vunpack.c.l.b16 %v635
  %v1027 = vunpack.c.l.b16 %v636
  %v1028 = vunpack.c.l.b16 %v637
  %v1029 = vunpack.c.l.b16 %v638
  %v1030 = vunpack.c.l.b16 %v639
  %v1031 = vunpack.c.l.b16 %v640
  %v1032 = vunpack.c.l.b16 %v641
  %v1033 = vunpack.c.l.b16 %v642
  %v1034 = vunpack.c.l.b16 %v643
  %v1035 = vunpack.c.l.b16 %v644
  %v1036 = vunpack.c.l.b16 %v645
  %v1037 = vunpack.c.l.b16 %v646
  %v1038 = vunpack.c.l.b16 %v647
  %v1039 = vunpack.c.l.b16 %v648
  %v1040 = vunpack.c.l.b16 %v649
  %v1041 = vunpack.c.l.b16 %v650
  %v1042 = vunpack.c.l.b16 %v651
  %v1043 = vunpack.c.l.b16 %v652
  %v1044 = vunpack.c.l.b16 %v653
  %v1045 = vunpack.c.l.b16 %v654
  %v1046 = vunpack.c.l.b16 %v655
  %v1047 = vunpack.c.l.b16 %v656
  %v1048 = vunpack.c.l.b16 %v657
  %v1049 = vunpack.c.l.b16 %v658
  %v1050 = vunpack.c.l.b16 %v659
  %v1051 = vunpack.c.l.b16 %v660
  %v1052 = vunpack.c.l.b16 %v661
  %v1053 = vunpack.c.l.b16 %v662
  %v1054 = vunpack.c.l.b16 %v663
  %v1055 = vunpack.c.l.b16 %v664
  %v1056 = vunpack.c.l.b16 %v665
  %v1057 = vunpack.c.l.b16 %v666
  %v1058 = vunpack.c.l.b16 %v667
  %v1059 = vunpack.c.l.b16 %v668
  %v1060 = vunpack.c.l.b16 %v669
  %v1061 = vunpack.c.l.b16 %v670
  %v1062 = vpack.c.b16 %v871, %v870
  %v1063 = vpack.c.b16 %v873, %v872
  %v1064 = vpack.c.b16 %v875, %v874
  %v1065 = vpack.c.b16 %v877, %v876
  %v1066 = vpack.c.b16 %v879, %v878
  %v1067 = vpack.c.b16 %v881, %v880
  %v1068 = vpack.c.b16 %v883, %v882
  %v1069 = vpack.c.b16 %v885, %v884
  %v1070 = vpack.c.b16 %v887, %v886
  %v1071 = vpack.c.b16 %v889, %v888
  %v1072 = vpack.c.b16 %v891, %v890
  %v1073 = vpack.c.b16 %v893, %v892
  %v1074 = vpack.c.b16 %v895, %v894
  %v1075 = vpack.c.b16 %v897, %v896
  %v1076 = vpack.c.b16 %v899, %v898
  %v1077 = vpack.c.b16 %v901, %v900
  %v1078 = vpack.c.b16 %v903, %v902
  %v1079 = vpack.c.b16 %v905, %v904
  %v1080 = vpack.c.b16 %v907, %v906
  %v1081 = vpack.c.b16 %v909, %v908
  %v1082 = vpack.c.b16 %v911, %v910
  %v1083 = vpack.c.b16 %v913, %v912
  %v1084 = vpack.c.b16 %v915, %v914
  %v1085 = vpack.c.b16 %v917, %v916
  %v1086 = vpack.c.b16 %v919, %v918
  %v1087 = vpack.c.b16 %v921, %v920
  %v1088 = vpack.c.b16 %v923, %v922
  %v1089 = vpack.c.b16 %v925, %v924
  %v1090 = vpack.c.b16 %v927, %v926
  %v1091 = vpack.c.b16 %v929, %v928
  %v1092 = vpack.c.b16 %v931, %v930
  %v1093 = vpack.c.b16 %v933, %v932
  %v1094 = vpack.c.b16 %v935, %v934
  %v1095 = vpack.c.b16 %v937, %v936
  %v1096 = vpack.c.b16 %v939, %v938
  %v1097 = vpack.c.b16 %v941, %v940
  %v1098 = vpack.c.b16 %v943, %v942
  %v1099 = vpack.c.b16 %v945, %v944
  %v1100 = vpack.c.b16 %v947, %v946
  %v1101 = vpack.c.b16 %v949, %v948
  %v1102 = vpack.c.b16 %v951, %v950
  %v1103 = vpack.c.b16 %v953, %v952
  %v1104 = vpack.c.b16 %v955, %v954
  %v1105 = vpack.c.b16 %v957, %v956
  %v1106 = vpack.c.b16 %v959, %v958
  %v1107 = vpack.c.b16 %v961, %v960
  %v1108 = vpack.c.b16 %v963, %v962
  %v1109 = vpack.c.b16 %v965, %v964
  %v1110 = vpack.c.b16 %v967, %v966
  %v1111 = vpack.c.b16 %v969, %v968
  %v1112 = vpack.c.b16 %v971, %v970
  %v1113 = vpack.c.b16 %v973, %v972
  %v1114 = vpack.c.b16 %v975, %v974
  %v1115 = vpack.c.b16 %v977, %v976
  %v1116 = vpack.c.b16 %v979, %v978
  %v1117 = vpack.c.b16 %v981, %v980
  %v1118 = vpack.c.b16 %v983, %v982
  %v1119 = vpack.c.b16 %v985, %v984
  %v1120 = vpack.c.b16 %v987, %v986
  %v1121 = vpack.c.b16 %v989, %v988
  %v1122 = vpack.c.b16 %v991, %v990
  %v1123 = vpack.c.b16 %v993, %v992
  %v1124 = vpack.c.b16 %v995, %v994
  %v1125 = vpack.c.b16 %v997, %v996
  %v1126 = vpack.c.b16 %v999, %v998
  %v1127 = vpack.c.b16 %v1001, %v1000
  %v1128 = vpack.c.b16 %v1003, %v1002
  %v1129 = vpack.c.b16 %v1005, %v1004
  %v1130 = vpack.c.b16 %v1007, %v1006
  %v1131 = vpack.c.b16 %v1009, %v1008
  %v1132 = vpack.c.b16 %v1011, %v1010
  %v1133 = vpack.c.b16 %v1013, %v1012
  %v1134 = vpack.c.b16 %v1015, %v1014
  %v1135 = vpack.c.b16 %v1017, %v1016
  %v1136 = vpack.c.b16 %v1019, %v1018
  %v1137 = vpack.c.b16 %v1021, %v1020
  %v1138 = vpack.c.b16 %v1023, %v1022
  %v1139 = vpack.c.b16 %v1025, %v1024
  %v1140 = vpack.c.b16 %v1027, %v1026
  %v1141 = vpack.c.b16 %v1029, %v1028
  %v1142 = vpack.c.b16 %v1031, %v1030
  %v1143 = vpack.c.b16 %v1033, %v1032
  %v1144 = vpack.c.b16 %v1035, %v1034
  %v1145 = vpack.c.b16 %v1037, %v1036
  %v1146 = vpack.c.b16 %v1039, %v1038
  %v1147 = vpack.c.b16 %v1041, %v1040
  %v1148 = vpack.c.b16 %v1043, %v1042
  %v1149 = vpack.c.b16 %v1045, %v1044
  %v1150 = vpack.c.b16 %v1047, %v1046
  %v1151 = vpack.c.b16 %v1049, %v1048
  %v1152 = vpack.c.b16 %v1051, %v1050
  %v1153 = vpack.c.b16 %v1053, %v1052
  %v1154 = vpack.c.b16 %v1055, %v1054
  %v1155 = vpack.c.b16 %v1057, %v1056
  %v1156 = vpack.c.b16 %v1059, %v1058
  %v1157 = vpack.c.b16 %v1061, %v1060
  %1254 = vmatprep.subr.bf16.mxu0 0
  %1255 = vmatpush1.bf16.msra.mxu0 %v1062
  %1256 = vmatprep.subr.bf16.mxu0 0
  %1257 = vmatpush1.bf16.msra.mxu0 %v1063
  %1258 = vmatprep.subr.bf16.mxu0 0
  %1259 = vmatpush1.bf16.msra.mxu0 %v1064
  %1260 = vmatprep.subr.bf16.mxu0 0
  %1261 = vmatpush1.bf16.msra.mxu0 %v1065
  %1262 = vmatprep.subr.bf16.mxu0 0
  %1263 = vmatpush1.bf16.msra.mxu0 %v1066
  %1264 = vmatprep.subr.bf16.mxu0 0
  %1265 = vmatpush1.bf16.msra.mxu0 %v1067
  %1266 = vmatprep.subr.bf16.mxu0 0
  %1267 = vmatpush1.bf16.msra.mxu0 %v1068
  %1268 = vmatprep.subr.bf16.mxu0 0
  %1269 = vmatpush1.bf16.msra.mxu0 %v1069
  %1270 = vmatprep.subr.bf16.mxu0 0
  %1271 = vmatpush1.bf16.msra.mxu0 %v1070
  %1272 = vmatprep.subr.bf16.mxu0 0
  %1273 = vmatpush1.bf16.msra.mxu0 %v1071
  %1274 = vmatprep.subr.bf16.mxu0 0
  %1275 = vmatpush1.bf16.msra.mxu0 %v1072
  %1276 = vmatprep.subr.bf16.mxu0 0
  %1277 = vmatpush1.bf16.msra.mxu0 %v1073
  %1278 = vmatprep.subr.bf16.mxu0 0
  %1279 = vmatpush1.bf16.msra.mxu0 %v1074
  %1280 = vmatprep.subr.bf16.mxu0 0
  %1281 = vmatpush1.bf16.msra.mxu0 %v1075
  %1282 = vmatprep.subr.bf16.mxu0 0
  %1283 = vmatpush1.bf16.msra.mxu0 %v1076
  %1284 = vmatprep.subr.bf16.mxu0 0
  %1285 = vmatpush1.bf16.msra.mxu0 %v1077
  %1286 = vmatprep.mubr.bf16.mxu0 %v468
  %1287 = vmatmul.mubr.bf16.gmra.mrb[0].mxu0 %v467
  %v1288 = vpop.f32.mrb[0].mxu0
  %v1289 = vadd.f32 %v676, %v1288
  %v1290 = vpop.f32.mrb[0].mxu0
  %v1291 = vpop.f32.mrb[0].mxu0
  %v1292 = vpop.f32.mrb[0].mxu0
  %1293 = vdwg.mxu0
  %1294 = vmatprep.subr.bf16.mxu0 0
  %1295 = vmatpush1.bf16.msra.mxu0 %v1078
  %1296 = vmatprep.subr.bf16.mxu0 0
  %1297 = vmatpush1.bf16.msra.mxu0 %v1079
  %1298 = vmatprep.subr.bf16.mxu0 0
  %1299 = vmatpush1.bf16.msra.mxu0 %v1080
  %1300 = vmatprep.subr.bf16.mxu0 0
  %1301 = vmatpush1.bf16.msra.mxu0 %v1081
  %1302 = vmatprep.subr.bf16.mxu0 0
  %1303 = vmatpush1.bf16.msra.mxu0 %v1082
  %1304 = vmatprep.subr.bf16.mxu0 0
  %1305 = vmatpush1.bf16.msra.mxu0 %v1083
  %1306 = vmatprep.subr.bf16.mxu0 0
  %1307 = vmatpush1.bf16.msra.mxu0 %v1084
  %1308 = vmatprep.subr.bf16.mxu0 0
  %1309 = vmatpush1.bf16.msra.mxu0 %v1085
  %1310 = vmatprep.subr.bf16.mxu0 0
  %1311 = vmatpush1.bf16.msra.mxu0 %v1086
  %1312 = vmatprep.subr.bf16.mxu0 0
  %1313 = vmatpush1.bf16.msra.mxu0 %v1087
  %1314 = vmatprep.subr.bf16.mxu0 0
  %1315 = vmatpush1.bf16.msra.mxu0 %v1088
  %1316 = vmatprep.subr.bf16.mxu0 0
  %1317 = vmatpush1.bf16.msra.mxu0 %v1089
  %1318 = vmatprep.subr.bf16.mxu0 0
  %1319 = vmatpush1.bf16.msra.mxu0 %v1090
  %1320 = vmatprep.subr.bf16.mxu0 0
  %1321 = vmatpush1.bf16.msra.mxu0 %v1091
  %1322 = vmatprep.subr.bf16.mxu0 0
  %1323 = vmatpush1.bf16.msra.mxu0 %v1092
  %1324 = vmatprep.subr.bf16.mxu0 0
  %1325 = vmatpush1.bf16.msra.mxu0 %v1093
  %1326 = vmatprep.mubr.bf16.mxu0 %v470
  %1327 = vmatmul.mubr.bf16.gmra.mrb[0].mxu0 %v469
  %v1328 = vpop.f32.mrb[0].mxu0
  %v1329 = vadd.f32 %v1289, %v1328
  %v1330 = vpop.f32.mrb[0].mxu0
  %v1331 = vpop.f32.mrb[0].mxu0
  %v1332 = vpop.f32.mrb[0].mxu0
  %1333 = vdwg.mxu0
  %1334 = vmatprep.subr.bf16.mxu0 0
  %1335 = vmatpush1.bf16.msra.mxu0 %v1094
  %1336 = vmatprep.subr.bf16.mxu0 0
  %1337 = vmatpush1.bf16.msra.mxu0 %v1095
  %1338 = vmatprep.subr.bf16.mxu0 0
  %1339 = vmatpush1.bf16.msra.mxu0 %v1096
  %1340 = vmatprep.subr.bf16.mxu0 0
  %1341 = vmatpush1.bf16.msra.mxu0 %v1097
  %1342 = vmatprep.subr.bf16.mxu0 0
  %1343 = vmatpush1.bf16.msra.mxu0 %v1098
  %1344 = vmatprep.subr.bf16.mxu0 0
  %1345 = vmatpush1.bf16.msra.mxu0 %v1099
  %1346 = vmatprep.subr.bf16.mxu0 0
  %1347 = vmatpush1.bf16.msra.mxu0 %v1100
  %1348 = vmatprep.subr.bf16.mxu0 0
  %1349 = vmatpush1.bf16.msra.mxu0 %v1101
  %1350 = vmatprep.subr.bf16.mxu0 0
  %1351 = vmatpush1.bf16.msra.mxu0 %v1102
  %1352 = vmatprep.subr.bf16.mxu0 0
  %1353 = vmatpush1.bf16.msra.mxu0 %v1103
  %1354 = vmatprep.subr.bf16.mxu0 0
  %1355 = vmatpush1.bf16.msra.mxu0 %v1104
  %1356 = vmatprep.subr.bf16.mxu0 0
  %1357 = vmatpush1.bf16.msra.mxu0 %v1105
  %1358 = vmatprep.subr.bf16.mxu0 0
  %1359 = vmatpush1.bf16.msra.mxu0 %v1106
  %1360 = vmatprep.subr.bf16.mxu0 0
  %1361 = vmatpush1.bf16.msra.mxu0 %v1107
  %1362 = vmatprep.subr.bf16.mxu0 0
  %1363 = vmatpush1.bf16.msra.mxu0 %v1108
  %1364 = vmatprep.subr.bf16.mxu0 0
  %1365 = vmatpush1.bf16.msra.mxu0 %v1109
  %1366 = vmatprep.mubr.bf16.mxu0 %v472
  %1367 = vmatmul.mubr.bf16.gmra.mrb[0].mxu0 %v471
  %v1368 = vpop.f32.mrb[0].mxu0
  %v1369 = vadd.f32 %v1329, %v1368
  %v1370 = vpop.f32.mrb[0].mxu0
  %v1371 = vpop.f32.mrb[0].mxu0
  %v1372 = vpop.f32.mrb[0].mxu0
  %1373 = vdwg.mxu0
  %1374 = vmatprep.subr.bf16.mxu0 0
  %1375 = vmatpush1.bf16.msra.mxu0 %v1110
  %1376 = vmatprep.subr.bf16.mxu0 0
  %1377 = vmatpush1.bf16.msra.mxu0 %v1111
  %1378 = vmatprep.subr.bf16.mxu0 0
  %1379 = vmatpush1.bf16.msra.mxu0 %v1112
  %1380 = vmatprep.subr.bf16.mxu0 0
  %1381 = vmatpush1.bf16.msra.mxu0 %v1113
  %1382 = vmatprep.subr.bf16.mxu0 0
  %1383 = vmatpush1.bf16.msra.mxu0 %v1114
  %1384 = vmatprep.subr.bf16.mxu0 0
  %1385 = vmatpush1.bf16.msra.mxu0 %v1115
  %1386 = vmatprep.subr.bf16.mxu0 0
  %1387 = vmatpush1.bf16.msra.mxu0 %v1116
  %1388 = vmatprep.subr.bf16.mxu0 0
  %1389 = vmatpush1.bf16.msra.mxu0 %v1117
  %1390 = vmatprep.subr.bf16.mxu0 0
  %1391 = vmatpush1.bf16.msra.mxu0 %v1118
  %1392 = vmatprep.subr.bf16.mxu0 0
  %1393 = vmatpush1.bf16.msra.mxu0 %v1119
  %1394 = vmatprep.subr.bf16.mxu0 0
  %1395 = vmatpush1.bf16.msra.mxu0 %v1120
  %1396 = vmatprep.subr.bf16.mxu0 0
  %1397 = vmatpush1.bf16.msra.mxu0 %v1121
  %1398 = vmatprep.subr.bf16.mxu0 0
  %1399 = vmatpush1.bf16.msra.mxu0 %v1122
  %1400 = vmatprep.subr.bf16.mxu0 0
  %1401 = vmatpush1.bf16.msra.mxu0 %v1123
  %1402 = vmatprep.subr.bf16.mxu0 0
  %1403 = vmatpush1.bf16.msra.mxu0 %v1124
  %1404 = vmatprep.subr.bf16.mxu0 0
  %1405 = vmatpush1.bf16.msra.mxu0 %v1125
  %1406 = vmatprep.mubr.bf16.mxu0 %v474
  %1407 = vmatmul.mubr.bf16.gmra.mrb[0].mxu0 %v473
  %v1408 = vpop.f32.mrb[0].mxu0
  %v1409 = vadd.f32 %v1369, %v1408
  %v1410 = vpop.f32.mrb[0].mxu0
  %v1411 = vpop.f32.mrb[0].mxu0
  %v1412 = vpop.f32.mrb[0].mxu0
  %1413 = vdwg.mxu0
  %1414 = vmatprep.subr.bf16.mxu0 0
  %1415 = vmatpush1.bf16.msra.mxu0 %v1126
  %1416 = vmatprep.subr.bf16.mxu0 0
  %1417 = vmatpush1.bf16.msra.mxu0 %v1127
  %1418 = vmatprep.subr.bf16.mxu0 0
  %1419 = vmatpush1.bf16.msra.mxu0 %v1128
  %1420 = vmatprep.subr.bf16.mxu0 0
  %1421 = vmatpush1.bf16.msra.mxu0 %v1129
  %1422 = vmatprep.subr.bf16.mxu0 0
  %1423 = vmatpush1.bf16.msra.mxu0 %v1130
  %1424 = vmatprep.subr.bf16.mxu0 0
  %1425 = vmatpush1.bf16.msra.mxu0 %v1131
  %1426 = vmatprep.subr.bf16.mxu0 0
  %1427 = vmatpush1.bf16.msra.mxu0 %v1132
  %1428 = vmatprep.subr.bf16.mxu0 0
  %1429 = vmatpush1.bf16.msra.mxu0 %v1133
  %1430 = vmatprep.subr.bf16.mxu0 0
  %1431 = vmatpush1.bf16.msra.mxu0 %v1134
  %1432 = vmatprep.subr.bf16.mxu0 0
  %1433 = vmatpush1.bf16.msra.mxu0 %v1135
  %1434 = vmatprep.subr.bf16.mxu0 0
  %1435 = vmatpush1.bf16.msra.mxu0 %v1136
  %1436 = vmatprep.subr.bf16.mxu0 0
  %1437 = vmatpush1.bf16.msra.mxu0 %v1137
  %1438 = vmatprep.subr.bf16.mxu0 0
  %1439 = vmatpush1.bf16.msra.mxu0 %v1138
  %1440 = vmatprep.subr.bf16.mxu0 0
  %1441 = vmatpush1.bf16.msra.mxu0 %v1139
  %1442 = vmatprep.subr.bf16.mxu0 0
  %1443 = vmatpush1.bf16.msra.mxu0 %v1140
  %1444 = vmatprep.subr.bf16.mxu0 0
  %1445 = vmatpush1.bf16.msra.mxu0 %v1141
  %1446 = vmatprep.mubr.bf16.mxu0 %v476
  %1447 = vmatmul.mubr.bf16.gmra.mrb[0].mxu0 %v475
  %v1448 = vpop.f32.mrb[0].mxu0
  %v1449 = vadd.f32 %v1409, %v1448
  %v1450 = vpop.f32.mrb[0].mxu0
  %v1451 = vpop.f32.mrb[0].mxu0
  %v1452 = vpop.f32.mrb[0].mxu0
  %1453 = vdwg.mxu0
  %1454 = vmatprep.subr.bf16.mxu0 0
  %1455 = vmatpush1.bf16.msra.mxu0 %v1142
  %1456 = vmatprep.subr.bf16.mxu0 0
  %1457 = vmatpush1.bf16.msra.mxu0 %v1143
  %1458 = vmatprep.subr.bf16.mxu0 0
  %1459 = vmatpush1.bf16.msra.mxu0 %v1144
  %1460 = vmatprep.subr.bf16.mxu0 0
  %1461 = vmatpush1.bf16.msra.mxu0 %v1145
  %1462 = vmatprep.subr.bf16.mxu0 0
  %1463 = vmatpush1.bf16.msra.mxu0 %v1146
  %1464 = vmatprep.subr.bf16.mxu0 0
  %1465 = vmatpush1.bf16.msra.mxu0 %v1147
  %1466 = vmatprep.subr.bf16.mxu0 0
  %1467 = vmatpush1.bf16.msra.mxu0 %v1148
  %1468 = vmatprep.subr.bf16.mxu0 0
  %1469 = vmatpush1.bf16.msra.mxu0 %v1149
  %1470 = vmatprep.subr.bf16.mxu0 0
  %1471 = vmatpush1.bf16.msra.mxu0 %v1150
  %1472 = vmatprep.subr.bf16.mxu0 0
  %1473 = vmatpush1.bf16.msra.mxu0 %v1151
  %1474 = vmatprep.subr.bf16.mxu0 0
  %1475 = vmatpush1.bf16.msra.mxu0 %v1152
  %1476 = vmatprep.subr.bf16.mxu0 0
  %1477 = vmatpush1.bf16.msra.mxu0 %v1153
  %1478 = vmatprep.subr.bf16.mxu0 0
  %1479 = vmatpush1.bf16.msra.mxu0 %v1154
  %1480 = vmatprep.subr.bf16.mxu0 0
  %1481 = vmatpush1.bf16.msra.mxu0 %v1155
  %1482 = vmatprep.subr.bf16.mxu0 0
  %1483 = vmatpush1.bf16.msra.mxu0 %v1156
  %1484 = vmatprep.subr.bf16.mxu0 0
  %1485 = vmatpush1.bf16.msra.mxu0 %v1157
  %1486 = vmatprep.mubr.bf16.mxu0 %v478
  %1487 = vmatmul.mubr.bf16.gmra.mrb[0].mxu0 %v477
  %v1488 = vpop.f32.mrb[0].mxu0
  %v1489 = vadd.f32 %v1449, %v1488
  %v1490 = vpop.f32.mrb[0].mxu0
  %v1491 = vpop.f32.mrb[0].mxu0
  %v1492 = vpop.f32.mrb[0].mxu0
  %1493 = vdwg.mxu0
  %vm1494 = vcmask 115712
  %1495 = vst.msk [vmem:[%s5] sm:$0x3] %vm1494, %v1489
  // Predicated region
  $region22: #{attr_model_forward.1} parent=0 // pred_check
    _
  $region23: #{attr_model_forward.1} parent=0 // pred_check_branch
    %1497 = sbr.rel (0) target = $region25
  $region24: #{attr_model_forward.1} parent=0 // pred_region
    _
  $region25: #{attr_model_forward.1} parent=0 // pred_fallthru
    _
  // Predicated region
  $region26: #{attr_model_forward.1} parent=0 // pred_check
    _
  $region27: #{attr_model_forward.1} parent=0 // pred_check_branch
    %1499 = sbr.rel (0) target = $region29
  $region28: #{attr_model_forward.1} parent=0 // pred_region
    _
  $region29: #{attr_model_forward.1} parent=0 // pred_fallthru
    _

</llo_original>
